<compile_context>
chip_gen: v7x
topology: tpu7x:2x2x1
jax: 0.10.0
libtpu: 0.0.40
codegen_flags: <defaults>
</compile_context>

<pallas_src>
import jax
import jax.numpy as jnp
from jax.experimental import pallas as pl
from jax.experimental.pallas import tpu as pltpu


def _soft_threshold_kernel(x_ref, t_ref, o_ref):
    # x_ref: (block_rows, block_cols)
    # t_ref: (block_rows, 1)  [row layout]  or  (1, block_cols)  [small-spatial]
    x = x_ref[...]
    # Hoist the broadcast once per tile; reuse in all four compare/add exprs.
    tb = jnp.broadcast_to(t_ref[...], x.shape)
    neg_tb = -tb
    zero = jnp.zeros_like(x)
    # Exact PyTorch formulation (valid even if a learned threshold goes negative).
    o_ref[...] = (
        jnp.where(x > tb, x - tb, zero) + jnp.where(x < neg_tb, x + tb, zero)
    )


def _round_up(v, m):
    return (v + m - 1) // m * m


def _pick_blocks(rows, cols, dtype):
    """Choose (block_rows, block_cols).

    block_cols: always a multiple of 128 (Pallas masks the ragged last tile),
    capped at 4096 lanes.  block_rows: multiple of the dtype's packed sublane
    count, sized by a ~4 MiB-per-buffer budget (double-buffered in+out stays
    well inside 32 MiB scoped VMEM on every generation, incl. v7x's 64 MiB)."""
    itemsize = jnp.dtype(dtype).itemsize
    sub = max(8, 32 // itemsize)          # 8 f32, 16 bf16, 32 int8/fp8
    block_cols = min(4096, _round_up(cols, 128))

    target_elems = (4 * 1024 * 1024) // itemsize    # ~4 MiB per block buffer
    budget_rows = max(sub, (target_elems // block_cols) // sub * sub)
    if rows <= sub:
        block_rows = rows                  # full-extent block dim is legal
    else:
        block_rows = min(budget_rows, (rows // sub) * sub)
    return block_rows, block_cols


def soft_threshold(x, threshold):
    """x: (N, C, H, W); threshold: (1, C, 1, 1). Same result as the PyTorch
    module's forward.

    Note: threshold is cast to x.dtype before comparing (matches a bf16 module;
    differs slightly from mixed-precision PyTorch where compares stay f32)."""
    N, C, H, W = x.shape
    hw = H * W
    t = threshold.reshape(C).astype(x.dtype)

    small_spatial = hw < 512
    if small_spatial:
        # (N, C*H*W): wide lane-dense rows; threshold pre-expanded per lane.
        rows, cols = N, C * hw
        x2d = x.reshape(rows, cols)
        thr = jnp.broadcast_to(t[:, None], (C, hw)).reshape(1, cols)
    else:
        # (N*C, H*W): per-row threshold column (row n*C + c -> t[c]).
        rows, cols = N * C, hw
        x2d = x.reshape(rows, cols)
        thr = jnp.broadcast_to(t[None, :], (N, C)).reshape(rows, 1)

    block_rows, block_cols = _pick_blocks(rows, cols, x.dtype)
    grid = (pl.cdiv(rows, block_rows), pl.cdiv(cols, block_cols))

    if small_spatial:
        # Tiny (<= 16 KiB) row tile, re-fetched per column tile.
        thr_spec = pl.BlockSpec((1, block_cols), lambda i, j: (0, j))
    else:
        # Block index constant over the inner (column) axis: the sub-KB DMA is
        # only issued when the row tile changes.
        thr_spec = pl.BlockSpec((block_rows, 1), lambda i, j: (i, 0))

    x_spec = pl.BlockSpec((block_rows, block_cols), lambda i, j: (i, j))

    out2d = pl.pallas_call(
        _soft_threshold_kernel,
        out_shape=jax.ShapeDtypeStruct((rows, cols), x.dtype),
        grid_spec=pltpu.PrefetchScalarGridSpec(
            num_scalar_prefetch=0,
            grid=grid,
            in_specs=[x_spec, thr_spec],
            out_specs=pl.BlockSpec((block_rows, block_cols), lambda i, j: (i, j)),
        ),
        compiler_params=pltpu.CompilerParams(
            dimension_semantics=("parallel", "parallel"),
            # ~16-17 MiB pipelined footprint (2x 4 MiB in + 2x 4 MiB out);
            # 32 MiB raises v5e's 16 MiB scoped default and stays well inside
            # v7x's 64 MiB physical VMEM.
            vmem_limit_bytes=32 * 1024 * 1024,
        ),
    )(x2d, thr)

    return out2d.reshape(N, C, H, W)


def soft_threshold_reference(x, threshold):
    mask1 = (x > threshold).astype(x.dtype)
    mask2 = (x < -threshold).astype(x.dtype)
    return mask1 * (x - threshold) + mask2 * (x + threshold)


if __name__ == "__main__":
    init_threshold = 0.001
    key = jax.random.PRNGKey(0)

    # Primary check: small spatial path (H*W = 256 < 512 -> (N, C*H*W) layout).
    N, C, H, W = 2, 4, 16, 16
    k1, k2 = jax.random.split(key)
    x = jax.random.normal(k1, (N, C, H, W), dtype=jnp.float32) * 0.01
    threshold = init_threshold * jnp.ones((1, C, 1, 1), dtype=jnp.float32)

    out = soft_threshold(x, threshold)
    out = jax.block_until_ready(out)
    ref = soft_threshold_reference(x, threshold)
    assert out.shape == (N, C, H, W)
    assert jnp.allclose(out, ref, atol=1e-6), "mismatch vs reference (small path)"

    # Secondary check: row-layout path (H*W = 576 >= 512, not a 128-multiple,
    # exercises the masked ragged column tile).
    N2, C2, H2, W2 = 2, 4, 24, 24
    x2 = jax.random.normal(k2, (N2, C2, H2, W2), dtype=jnp.float32) * 0.01
    threshold2 = init_threshold * jnp.ones((1, C2, 1, 1), dtype=jnp.float32)
    out2 = jax.block_until_ready(soft_threshold(x2, threshold2))
    ref2 = soft_threshold_reference(x2, threshold2)
    assert jnp.allclose(out2, ref2, atol=1e-6), "mismatch vs reference (row path)"

    print("KERNEL_OK")
</pallas_src>

<mosaic_0001>
module attributes {stable_mosaic.version = 11 : i64} {
  func.func @_soft_threshold_kernel(%arg0: i32, %arg1: i32, %arg2: memref<2x1024xf32, #tpu.memory_space<vmem>>, %arg3: memref<1x1024xf32, #tpu.memory_space<vmem>>, %arg4: memref<2x1024xf32, #tpu.memory_space<vmem>>) attributes {dimension_semantics = [#tpu.dimension_semantics<parallel>, #tpu.dimension_semantics<parallel>], iteration_bounds = array<i64: 1, 1>, scalar_prefetch = 0 : i64, scratch_operands = 0 : i64, tpu.core_type = #tpu.core_type<tc>, window_params = [{transform_indices = @transform_0, window_bounds = array<i64: 2, 1024>}, {transform_indices = @transform_1, window_bounds = array<i64: 1, 1024>}, {transform_indices = @transform_2, window_bounds = array<i64: 2, 1024>}]} {
    %c0 = arith.constant 0 : index
    %c0_0 = arith.constant 0 : index
    %0 = vector.load %arg2[%c0, %c0_0] : memref<2x1024xf32, #tpu.memory_space<vmem>>, vector<2x1024xf32>
    %c0_1 = arith.constant 0 : index
    %c0_2 = arith.constant 0 : index
    %1 = vector.load %arg3[%c0_1, %c0_2] : memref<1x1024xf32, #tpu.memory_space<vmem>>, vector<1x1024xf32>
    %2 = vector.shape_cast %1 : vector<1x1024xf32> to vector<1x1024xf32>
    %3 = vector.broadcast %2 : vector<1x1024xf32> to vector<2x1024xf32>
    %cst = arith.constant 0.000000e+00 : f32
    %4 = vector.broadcast %cst : f32 to vector<2x1024xf32>
    %5 = arith.subf %4, %3 : vector<2x1024xf32>
    %cst_3 = arith.constant 0.000000e+00 : f32
    %6 = vector.broadcast %cst_3 : f32 to vector<2x1024xf32>
    %7 = arith.cmpf ogt, %0, %3 : vector<2x1024xf32>
    %8 = arith.subf %0, %3 : vector<2x1024xf32>
    %9 = arith.select %7, %8, %6 : vector<2x1024xi1>, vector<2x1024xf32>
    %10 = arith.cmpf olt, %0, %5 : vector<2x1024xf32>
    %11 = arith.addf %0, %3 : vector<2x1024xf32>
    %12 = arith.select %10, %11, %6 : vector<2x1024xi1>, vector<2x1024xf32>
    %13 = arith.addf %9, %12 : vector<2x1024xf32>
    %c0_4 = arith.constant 0 : index
    %c0_5 = arith.constant 0 : index
    %14 = vector.load %arg4[%c0_4, %c0_5] : memref<2x1024xf32, #tpu.memory_space<vmem>>, vector<2x1024xf32>
    tpu.vector_store %arg4[%c0_4, %c0_5], %13 {strides = array<i32>} : memref<2x1024xf32, #tpu.memory_space<vmem>>, vector<2x1024xf32>,
    return
  }
  func.func @transform_0(%arg0: i32, %arg1: i32) -> (i32, i32) {
    %c0_i32 = arith.constant 0 : i32
    return %arg0, %arg1 : i32, i32
  }
  func.func @transform_1(%arg0: i32, %arg1: i32) -> (i32, i32) {
    %c0_i32 = arith.constant 0 : i32
    %c0_i32_0 = arith.constant 0 : i32
    return %c0_i32, %arg1 : i32, i32
  }
  func.func @transform_2(%arg0: i32, %arg1: i32) -> (i32, i32) {
    %c0_i32 = arith.constant 0 : i32
    return %arg0, %arg1 : i32, i32
  }
}

</mosaic_0001>

<llo_original>
// kernel: tpu_custom_call.1
$region0: #{tpu_custom_call.1}
  #allocation0 [shape = 'u32[]', space=smem, size = 0x4, offset = 0x4, fixed_abs, tag = 'smem constant byte address 0x4 - core index']
  #allocation1 [shape = 'u32[144,128]{1,0:T(1,128)}', space=vmem, size = 0x12000, scoped, tag = 'internal scratch']
  %s0 = inlined_call_operand.hbm [shape: f32[2,1024], index: 0, kind: input, shape index: {}]
  %s1 = inlined_call_operand.hbm [shape: f32[1,1024], index: 1, kind: input, shape index: {}]
  %s2 = inlined_call_operand.hbm [shape: f32[2,1024], index: 2, kind: output, shape index: {}]
  %s3 = sld [smem:[#allocation0]]
  $region26: #{tpu_custom_call.1} parent=0
    _
  %s5 = ssub.s32 1, %s3
  %s6 = scalar_select 0, %s5, %s3
  $region1: #{tpu_custom_call.1} parent=0
    #allocation2 [shape = 'u8[8192]{0}', space=vmem, size = 0x2000, scoped, tag = 'input window, operand 0, single buffered']
    #allocation3 [shape = 's32[1]{0}', space=sflag, size = 0x4, scoped, tag = 'scoped memory for tpu_custom_call.1']
    #allocation4 [shape = 's32[1]{0}', space=sflag, size = 0x4, scoped, tag = 'scoped memory for tpu_custom_call.1']
    #allocation5 [shape = 'u8[4096]{0}', space=vmem, size = 0x1000, scoped, tag = 'input window, operand 1, single buffered']
    #allocation6 [shape = 's32[1]{0}', space=sflag, size = 0x4, scoped, tag = 'scoped memory for tpu_custom_call.1']
    #allocation7 [shape = 'u8[8192]{0}', space=vmem, size = 0x2000, scoped, tag = 'output window, operand 0, single buffered']
    %7 = vsyncpa [#allocation3], 0
    %8 = vsyncpa [#allocation6], 0
    %9 = vsyncpa [#allocation4], 0
    // Predicated region
    $region2: #{tpu_custom_call.1} parent=1 // pred_check
      _
    $region3: #{tpu_custom_call.1} parent=1 // pred_check_branch
      %11 = sbr.rel (0) target = $region5
    $region4: #{tpu_custom_call.1} parent=1 // pred_region
      %s13 = ssub.s32 256, 256
      %14 = vsyncadd [#allocation3], %s13
      %s16 = sshll.u32 [#allocation2], 4
      %s17 = int_to_ptr.vmem [resolvable:$true] %s16
      %19 = dma.hbm_to_vmem [thread:$0]  %s0, 256, %s17, [#allocation3]
    $region5: #{tpu_custom_call.1} parent=1 // pred_fallthru
      _
    // Predicated region
    $region6: #{tpu_custom_call.1} parent=1 // pred_check
      _
    $region7: #{tpu_custom_call.1} parent=1 // pred_check_branch
      %21 = sbr.rel (0) target = $region9
    $region8: #{tpu_custom_call.1} parent=1 // pred_region
      %s23 = ssub.s32 128, 128
      %24 = vsyncadd [#allocation6], %s23
      %s26 = sshll.u32 [#allocation5], 4
      %s27 = int_to_ptr.vmem [resolvable:$true] %s26
      %29 = dma.hbm_to_vmem [thread:$0]  %s1, 128, %s27, [#allocation6]
    $region9: #{tpu_custom_call.1} parent=1 // pred_fallthru
      _
    // Predicated region
    $region10: #{tpu_custom_call.1} parent=1 // pred_check
      _
    $region11: #{tpu_custom_call.1} parent=1 // pred_check_branch
      %31 = sbr.rel (0) target = $region13
    $region12: #{tpu_custom_call.1} parent=1 // pred_region
      %32 = dma.done [#allocation3], 256
    $region13: #{tpu_custom_call.1} parent=1 // pred_fallthru
      _
    // Predicated region
    $region14: #{tpu_custom_call.1} parent=1 // pred_check
      _
    $region15: #{tpu_custom_call.1} parent=1 // pred_check_branch
      %34 = sbr.rel (0) target = $region17
    $region16: #{tpu_custom_call.1} parent=1 // pred_region
      %35 = dma.done [#allocation6], 128
    $region17: #{tpu_custom_call.1} parent=1 // pred_fallthru
      _
    %v36 = vld [vmem:[#allocation2] sm:$0xff]
    %v37 = vld [vmem:[#allocation2 + $0x8] sm:$0xff]
    %v38 = vld [vmem:[#allocation5] sm:$0xff]
    %v40 = vlaneseq
    %v41 = vshrl.u32 %v40, 7
    %v42 = vsub.s32 0, %v41
    %v43 = vrot.slane %v38, %v42
    %v44 = vlaneseq
    %v45 = vshrl.u32 %v44, 7
    %v46 = vsub.s32 1, %v45
    %v47 = vrot.slane %v38, %v46
    %v48 = vlaneseq
    %v49 = vshrl.u32 %v48, 7
    %v50 = vsub.s32 2, %v49
    %v51 = vrot.slane %v38, %v50
    %v52 = vlaneseq
    %v53 = vshrl.u32 %v52, 7
    %v54 = vsub.s32 3, %v53
    %v55 = vrot.slane %v38, %v54
    %v56 = vlaneseq
    %v57 = vshrl.u32 %v56, 7
    %v58 = vsub.s32 4, %v57
    %v59 = vrot.slane %v38, %v58
    %v60 = vlaneseq
    %v61 = vshrl.u32 %v60, 7
    %v62 = vsub.s32 5, %v61
    %v63 = vrot.slane %v38, %v62
    %v64 = vlaneseq
    %v65 = vshrl.u32 %v64, 7
    %v66 = vsub.s32 6, %v65
    %v67 = vrot.slane %v38, %v66
    %v68 = vlaneseq
    %v69 = vshrl.u32 %v68, 7
    %v70 = vsub.s32 7, %v69
    %v71 = vrot.slane %v38, %v70
    %v80 = vsub.f32 0.0, %v43
    %v81 = vsub.f32 0.0, %v47
    %v82 = vsub.f32 0.0, %v51
    %v83 = vsub.f32 0.0, %v55
    %v84 = vsub.f32 0.0, %v59
    %v85 = vsub.f32 0.0, %v63
    %v86 = vsub.f32 0.0, %v67
    %v87 = vsub.f32 0.0, %v71
    %v88 = vcombine.low %v43, %v47
    %v89 = vcombine.low %v51, %v55
    %v91 = vunpack.c.l.s4 1983009808
    %v92 = vunpack.c.0.s8 %v91
    %v93 = vlaneseq
    %v94 = vshrl.u32 %v93, 7
    %v95 = vsub.s32 %v92, %v94
    %v96 = vrot.slane %v88, %v95
    %v98 = vunpack.c.l.s4 1983009808
    %v99 = vunpack.c.0.s8 %v98
    %v100 = vlaneseq
    %v101 = vshrl.u32 %v100, 7
    %v102 = vsub.s32 %v99, %v101
    %v103 = vrot.slane %v89, %v102
    %v104 = vcombine.low %v96, %v103
    %v105 = vcombine.low %v59, %v63
    %v106 = vcombine.low %v67, %v71
    %v108 = vunpack.c.l.s4 1983009808
    %v109 = vunpack.c.0.s8 %v108
    %v110 = vlaneseq
    %v111 = vshrl.u32 %v110, 7
    %v112 = vsub.s32 %v109, %v111
    %v113 = vrot.slane %v105, %v112
    %v115 = vunpack.c.l.s4 1983009808
    %v116 = vunpack.c.0.s8 %v115
    %v117 = vlaneseq
    %v118 = vshrl.u32 %v117, 7
    %v119 = vsub.s32 %v116, %v118
    %v120 = vrot.slane %v106, %v119
    %v121 = vcombine.low %v113, %v120
    %vm124 = vcmp.gt.f32.partialorder %v36, %v104
    %vm125 = vcmp.gt.f32.partialorder %v37, %v121
    %v126 = vsub.f32 %v36, %v104
    %v127 = vsub.f32 %v37, %v121
    %v128 = vsel %vm124, %v126, 0.0
    %v129 = vsel %vm125, %v127, 0.0
    %v138 = vcombine.low %v80, %v81
    %v139 = vcombine.low %v82, %v83
    %v141 = vunpack.c.l.s4 1983009808
    %v142 = vunpack.c.0.s8 %v141
    %v143 = vlaneseq
    %v144 = vshrl.u32 %v143, 7
    %v145 = vsub.s32 %v142, %v144
    %v146 = vrot.slane %v138, %v145
    %v148 = vunpack.c.l.s4 1983009808
    %v149 = vunpack.c.0.s8 %v148
    %v150 = vlaneseq
    %v151 = vshrl.u32 %v150, 7
    %v152 = vsub.s32 %v149, %v151
    %v153 = vrot.slane %v139, %v152
    %v154 = vcombine.low %v146, %v153
    %v155 = vcombine.low %v84, %v85
    %v156 = vcombine.low %v86, %v87
    %v158 = vunpack.c.l.s4 1983009808
    %v159 = vunpack.c.0.s8 %v158
    %v160 = vlaneseq
    %v161 = vshrl.u32 %v160, 7
    %v162 = vsub.s32 %v159, %v161
    %v163 = vrot.slane %v155, %v162
    %v165 = vunpack.c.l.s4 1983009808
    %v166 = vunpack.c.0.s8 %v165
    %v167 = vlaneseq
    %v168 = vshrl.u32 %v167, 7
    %v169 = vsub.s32 %v166, %v168
    %v170 = vrot.slane %v156, %v169
    %v171 = vcombine.low %v163, %v170
    %vm174 = vcmp.lt.f32.partialorder %v36, %v154
    %vm175 = vcmp.lt.f32.partialorder %v37, %v171
    %v176 = vadd.f32 %v36, %v104
    %v177 = vadd.f32 %v37, %v121
    %v178 = vsel %vm174, %v176, 0.0
    %v179 = vsel %vm175, %v177, 0.0
    %v180 = vadd.f32 %v128, %v178
    %v181 = vadd.f32 %v129, %v179
    %182 = vst [vmem:[#allocation7] sm:$0xff] %v180
    %183 = vst [vmem:[#allocation7 + $0x8] sm:$0xff] %v181
    // Predicated region
    $region18: #{tpu_custom_call.1} parent=1 // pred_check
      _
    $region19: #{tpu_custom_call.1} parent=1 // pred_check_branch
      %185 = sbr.rel (0) target = $region21
    $region20: #{tpu_custom_call.1} parent=1 // pred_region
      %s187 = ssub.s32 256, 256
      %188 = vsyncadd [#allocation4], %s187
      %s190 = sshll.u32 [#allocation7], 4
      %s191 = int_to_ptr.vmem [resolvable:$true] %s190
      %193 = dma.vmem_to_hbm [thread:$0]  %s191, 256, %s2, [#allocation4]
    $region21: #{tpu_custom_call.1} parent=1 // pred_fallthru
      _
    // Predicated region
    $region22: #{tpu_custom_call.1} parent=1 // pred_check
      _
    $region23: #{tpu_custom_call.1} parent=1 // pred_check_branch
      %195 = sbr.rel (0) target = $region25
    $region24: #{tpu_custom_call.1} parent=1 // pred_region
      %196 = dma.done [#allocation4], 256
    $region25: #{tpu_custom_call.1} parent=1 // pred_fallthru
      _
    %197 = vsyncpa [#allocation3], 1
    %198 = vsyncpa [#allocation6], 1
    %199 = vsyncpa [#allocation4], 1

</llo_original>
